<compile_context>
chip_gen: v5e
topology: v5e:2x2
jax: 0.10.0
libtpu: 0.0.40
codegen_flags: <defaults>
</compile_context>

<pallas_src>
import math
import jax
import jax.numpy as jnp
import numpy as np
from jax.experimental import pallas as pl
from jax.experimental.pallas import tpu as pltpu


def _round_up(v, m):
    return ((v + m - 1) // m) * m


def _make_stats_kernel(hw_actual, tile_hw, needs_mask):
    """Builds the single-pass reduction kernel (hw_actual/tile_hw are static)."""

    def kernel(x_ref, out_ref, acc_xmax, acc_x2min, acc_x2max, acc_smin, acc_smax):
        n = pl.program_id(0)
        j = pl.program_id(1)
        is_first = jnp.logical_and(n == 0, j == 0)
        is_last = jnp.logical_and(n == pl.num_programs(0) - 1,
                                  j == pl.num_programs(1) - 1)

        @pl.when(is_first)
        def _init():
            acc_xmax[...] = jnp.full(acc_xmax.shape, -jnp.inf, jnp.float32)
            acc_x2min[...] = jnp.full(acc_x2min.shape, jnp.inf, jnp.float32)
            acc_x2max[...] = jnp.full(acc_x2max.shape, -jnp.inf, jnp.float32)
            acc_smin[...] = jnp.full(acc_smin.shape, jnp.inf, jnp.float32)
            acc_smax[...] = jnp.full(acc_smax.shape, -jnp.inf, jnp.float32)

        # (C, tile_hw) tile; cast to f32 in-kernel (DMA stays in native dtype).
        x = x_ref[0].astype(jnp.float32)
        x2 = x * x                                      # single full-tile temp
        ch_sum = jnp.sum(x2, axis=0, keepdims=True)     # (1, tile_hw) XLU reduce

        if needs_mask:
            lane = jax.lax.broadcasted_iota(jnp.int32, x.shape, dimension=1)
            valid = (j * tile_hw + lane) < hw_actual
            ninf = jnp.float32(-jnp.inf)
            pinf = jnp.float32(jnp.inf)
            x_for_max = jnp.where(valid, x, ninf)
            x2_for_min = jnp.where(valid, x2, pinf)
            x2_for_max = jnp.where(valid, x2, ninf)
            vrow = valid[:1, :]
            s_for_min = jnp.where(vrow, ch_sum, pinf)
            s_for_max = jnp.where(vrow, ch_sum, ninf)
        else:
            x_for_max, x2_for_min, x2_for_max = x, x2, x2
            s_for_min = ch_sum
            s_for_max = ch_sum

        # Per-lane running accumulators (VPU only; no per-step scalar pops).
        acc_xmax[...] = jnp.maximum(acc_xmax[...],
                                    jnp.max(x_for_max, axis=0, keepdims=True))
        acc_x2min[...] = jnp.minimum(acc_x2min[...],
                                     jnp.min(x2_for_min, axis=0, keepdims=True))
        acc_x2max[...] = jnp.maximum(acc_x2max[...],
                                     jnp.max(x2_for_max, axis=0, keepdims=True))
        acc_smin[...] = jnp.minimum(acc_smin[...], s_for_min)
        acc_smax[...] = jnp.maximum(acc_smax[...], s_for_max)

        @pl.when(is_last)
        def _finalize():
            out_ref[0] = jnp.max(acc_xmax[...])    # max(x)
            out_ref[1] = jnp.min(acc_x2min[...])   # min(x^2)
            out_ref[2] = jnp.max(acc_x2max[...])   # max(x^2)
            out_ref[3] = jnp.min(acc_smin[...])    # min over (n,hw) of sum_C x^2
            out_ref[4] = jnp.max(acc_smax[...])    # max over (n,hw) of sum_C x^2

    return kernel


def norm_observer_stats(x_nchw, *, target_tile_bytes=2 * 1024 * 1024,
                        interpret=False):
    """Single-pass tiled reduction. Returns (x_max, [c1_min, c1_max],
    [c2_min, c2_max]) as float32 arrays, matching the PyTorch observer math."""
    N, C, H, W = x_nchw.shape
    hw = H * W
    x3 = x_nchw.reshape(N, C, hw)

    # Lane (HW) tile: multiple of 128, sized so the f32 compute footprint of a
    # tile is ~target_tile_bytes. Small inputs collapse to tile_hw == HW
    # (grid (N, 1)), which is effectively the small-input fast path.
    compute_itemsize = 4  # in-kernel f32 temporaries dominate, not the DMA dtype
    max_lanes = max(128, (target_tile_bytes // max(1, C * compute_itemsize))
                    // 128 * 128)
    tile_hw = min(_round_up(hw, 128), max_lanes)
    hw_padded = _round_up(hw, tile_hw)
    needs_mask = hw_padded != hw
    if needs_mask:
        x3 = jnp.pad(x3, ((0, 0), (0, 0), (0, hw_padded - hw)))
    grid = (N, hw_padded // tile_hw)

    kernel = _make_stats_kernel(hw, tile_hw, needs_mask)

    raw = pl.pallas_call(
        kernel,
        out_shape=jax.ShapeDtypeStruct((5,), jnp.float32),
        grid_spec=pltpu.PrefetchScalarGridSpec(
            num_scalar_prefetch=0,
            grid=grid,
            in_specs=[pl.BlockSpec((1, C, tile_hw), lambda n, j: (n, 0, j))],
            out_specs=pl.BlockSpec(memory_space=pltpu.MemorySpace.SMEM),
            scratch_shapes=[pltpu.VMEM((1, tile_hw), jnp.float32)] * 5,
        ),
        compiler_params=pltpu.CompilerParams(
            dimension_semantics=("arbitrary", "arbitrary"),
            vmem_limit_bytes=32 * 1024 * 1024,
        ),
        interpret=interpret,
    )(x3)

    # Scalar epilogue (monotone transforms of the raw accumulators).
    x_max = raw[0]
    inv_sq = 1.0 / (x_max * x_max)
    c1_min = raw[1] * inv_sq
    c1_max = raw[2] * inv_sq
    inv_abs = 1.0 / jnp.abs(x_max)
    c2_min = jnp.sqrt(raw[3]) * inv_abs + 1e-10
    c2_max = jnp.sqrt(raw[4]) * inv_abs + 1e-10
    return x_max, jnp.stack([c1_min, c1_max]), jnp.stack([c2_min, c2_max])


# default qscheme (mlu_qscheme in the original file)
_MLU_QSCHEME = {"iteration": 1, "per_channel": False}


class MLUNormObserver:
    """JAX port of torch_mlu MLUNormObserver. Hot-path reductions run in the
    Pallas kernel above; running-boundary bookkeeping and qparam math stay as
    plain Python scalar glue (same as the original module)."""

    def __init__(self, dtype="int8", qscheme=None):
        self.dtype = dtype
        self.qscheme = dict(_MLU_QSCHEME)
        if qscheme is not None:
            self.qscheme.update(qscheme)
        self.ncalls = 0
        self.boundary_1 = None
        self.boundary_2 = None
        self.scale = None

    def get_count(self):
        return self.qscheme["iteration"]

    def forward(self, x_orig):
        # counter('get_count') semantics: only observe up to `iteration` calls
        if self.get_count() <= self.ncalls:
            print("[warning] It seems that evaluation reaches maxium img_num "
                  "or iteration is in network. Quantization still works.")
            return
        self.ncalls += 1

        if self.dtype in {"int8", "int16"}:
            _, b1, b2 = norm_observer_stats(x_orig)
            b1 = np.asarray(jax.device_get(b1), dtype=np.float64)
            b2 = np.asarray(jax.device_get(b2), dtype=np.float64)
            c1_min, c1_max = float(b1[0]), float(b1[1])
            c2_min, c2_max = float(b2[0]), float(b2[1])
            if self.boundary_1 is None or self.boundary_2 is None:
                self.boundary_1 = [c1_min, c1_max]
                self.boundary_2 = [c2_min, c2_max]
            else:
                self.boundary_1 = [min(self.boundary_1[0], c1_min),
                                   max(self.boundary_1[1], c1_max)]
                self.boundary_2 = [min(self.boundary_2[0], c2_min),
                                   max(self.boundary_2[1], c2_max)]

    __call__ = forward

    def _calculate_qparams(self, min_val, max_val):
        if max_val is None or min_val is None:
            return 1.0
        if math.isnan(max_val) or math.isnan(min_val):
            return 1.0
        assert min_val <= max_val
        if self.dtype == "int8":
            qmin, qmax = -128.0, 127.0
        elif self.dtype == "int16":
            qmin, qmax = -32768.0, 32767.0
        else:
            qmin, qmax = -128.0, 127.0
        scale = 1.0
        absmax = max(float(max_val), -float(min_val))
        if absmax != 0:
            scale = qmax / absmax
        return scale

    def calculate_qparams(self):
        scale1 = self._calculate_qparams(*self.boundary_1)
        scale2 = self._calculate_qparams(*self.boundary_2)
        self.scale = [scale1, scale2]
        return self.scale


def _reference_stats(x):
    """Pure-JAX reference mirroring the PyTorch forward exactly."""
    x = x.astype(jnp.float32)
    x_max = jnp.max(x)
    b = x * (1.0 / x_max)
    c1 = b * b
    c2 = jnp.sqrt(jnp.sum(c1, axis=1)) + 1e-10
    return (jnp.min(c1), jnp.max(c1), jnp.min(c2), jnp.max(c2))


def _check(x, **kwargs):
    xmax, b1, b2 = norm_observer_stats(x, **kwargs)
    jax.block_until_ready((xmax, b1, b2))
    x3 = x.reshape(x.shape[0], x.shape[1], -1)
    r_c1_min, r_c1_max, r_c2_min, r_c2_max = _reference_stats(x3)
    np.testing.assert_allclose(np.asarray(b1),
                               np.asarray([r_c1_min, r_c1_max]),
                               rtol=1e-5, atol=1e-6)
    np.testing.assert_allclose(np.asarray(b2),
                               np.asarray([r_c2_min, r_c2_max]),
                               rtol=1e-5, atol=1e-6)
    np.testing.assert_allclose(np.asarray(xmax), np.asarray(jnp.max(x)),
                               rtol=1e-6, atol=1e-6)


if __name__ == "__main__":
    key = jax.random.PRNGKey(0)
    k1, k2 = jax.random.split(key)

    # Case 1: canonical small test shape, single HW tile (grid (2, 1)).
    x = jax.random.normal(k1, (2, 4, 16, 16), dtype=jnp.float32)
    _check(x)

    # Case 2: same input, forced tiny tiles -> multi-tile accumulation path.
    _check(x, target_tile_bytes=2048)

    # Case 3: HW not a multiple of 128 -> exercises the lane-masking path.
    x_odd = jax.random.normal(k2, (2, 3, 10, 10), dtype=jnp.float32)
    _check(x_odd)

    # Observer module usage (running boundaries + qparams).
    obs = MLUNormObserver(dtype="int8", qscheme={"iteration": 2})
    obs(x)
    obs(x_odd)
    obs(x)  # exceeds iteration count -> warning path, boundaries unchanged
    scales = obs.calculate_qparams()
    assert len(scales) == 2 and all(math.isfinite(s) for s in scales)

    print("KERNEL_OK")
</pallas_src>

<mosaic_0001>
module attributes {stable_mosaic.version = 11 : i64} {
  func.func @kernel(%arg0: i32, %arg1: i32, %arg2: memref<1x4x256xf32, #tpu.memory_space<vmem>>, %arg3: memref<5xf32, #tpu.memory_space<smem>>, %arg4: memref<1x256xf32, #tpu.memory_space<vmem>>, %arg5: memref<1x256xf32, #tpu.memory_space<vmem>>, %arg6: memref<1x256xf32, #tpu.memory_space<vmem>>, %arg7: memref<1x256xf32, #tpu.memory_space<vmem>>, %arg8: memref<1x256xf32, #tpu.memory_space<vmem>>) attributes {dimension_semantics = [#tpu.dimension_semantics<arbitrary>, #tpu.dimension_semantics<arbitrary>], iteration_bounds = array<i64: 2, 1>, scalar_prefetch = 0 : i64, scratch_operands = 5 : i64, tpu.core_type = #tpu.core_type<tc>, window_params = [{transform_indices = @transform_0, window_bounds = array<i64: 1, 4, 256>}, {transform_indices = @transform_1, window_bounds = array<i64: 5>}]} {
    %c0_i32 = arith.constant 0 : i32
    %0 = arith.cmpi eq, %arg0, %c0_i32 : i32
    %c0_i32_0 = arith.constant 0 : i32
    %1 = arith.cmpi eq, %arg1, %c0_i32_0 : i32
    %2 = arith.andi %0, %1 : i1
    %c1_i32 = arith.constant 1 : i32
    %3 = arith.cmpi eq, %arg0, %c1_i32 : i32
    %c0_i32_1 = arith.constant 0 : i32
    %4 = arith.cmpi eq, %arg1, %c0_i32_1 : i32
    %5 = arith.andi %3, %4 : i1
    %6 = arith.extui %2 : i1 to i32
    %c0_i32_2 = arith.constant 0 : i32
    %7 = arith.cmpi ne, %6, %c0_i32_2 : i32
    scf.if %7 {
      %cst_29 = arith.constant 0xFF800000 : f32
      %36 = vector.broadcast %cst_29 : f32 to vector<1x256xf32>
      %c0_30 = arith.constant 0 : index
      %c0_31 = arith.constant 0 : index
      %37 = vector.load %arg4[%c0_30, %c0_31] : memref<1x256xf32, #tpu.memory_space<vmem>>, vector<1x256xf32>
      tpu.vector_store %arg4[%c0_30, %c0_31], %36 {strides = array<i32>} : memref<1x256xf32, #tpu.memory_space<vmem>>, vector<1x256xf32>,
      %cst_32 = arith.constant 0x7F800000 : f32
      %38 = vector.broadcast %cst_32 : f32 to vector<1x256xf32>
      %c0_33 = arith.constant 0 : index
      %c0_34 = arith.constant 0 : index
      %39 = vector.load %arg5[%c0_33, %c0_34] : memref<1x256xf32, #tpu.memory_space<vmem>>, vector<1x256xf32>
      tpu.vector_store %arg5[%c0_33, %c0_34], %38 {strides = array<i32>} : memref<1x256xf32, #tpu.memory_space<vmem>>, vector<1x256xf32>,
      %cst_35 = arith.constant 0xFF800000 : f32
      %40 = vector.broadcast %cst_35 : f32 to vector<1x256xf32>
      %c0_36 = arith.constant 0 : index
      %c0_37 = arith.constant 0 : index
      %41 = vector.load %arg6[%c0_36, %c0_37] : memref<1x256xf32, #tpu.memory_space<vmem>>, vector<1x256xf32>
      tpu.vector_store %arg6[%c0_36, %c0_37], %40 {strides = array<i32>} : memref<1x256xf32, #tpu.memory_space<vmem>>, vector<1x256xf32>,
      %cst_38 = arith.constant 0x7F800000 : f32
      %42 = vector.broadcast %cst_38 : f32 to vector<1x256xf32>
      %c0_39 = arith.constant 0 : index
      %c0_40 = arith.constant 0 : index
      %43 = vector.load %arg7[%c0_39, %c0_40] : memref<1x256xf32, #tpu.memory_space<vmem>>, vector<1x256xf32>
      tpu.vector_store %arg7[%c0_39, %c0_40], %42 {strides = array<i32>} : memref<1x256xf32, #tpu.memory_space<vmem>>, vector<1x256xf32>,
      %cst_41 = arith.constant 0xFF800000 : f32
      %44 = vector.broadcast %cst_41 : f32 to vector<1x256xf32>
      %c0_42 = arith.constant 0 : index
      %c0_43 = arith.constant 0 : index
      %45 = vector.load %arg8[%c0_42, %c0_43] : memref<1x256xf32, #tpu.memory_space<vmem>>, vector<1x256xf32>
      tpu.vector_store %arg8[%c0_42, %c0_43], %44 {strides = array<i32>} : memref<1x256xf32, #tpu.memory_space<vmem>>, vector<1x256xf32>,
    } else {
    }
    %c0 = arith.constant 0 : index
    %c0_3 = arith.constant 0 : index
    %c0_4 = arith.constant 0 : index
    %8 = vector.load %arg2[%c0, %c0_3, %c0_4] : memref<1x4x256xf32, #tpu.memory_space<vmem>>, vector<1x4x256xf32>
    %9 = vector.shape_cast %8 : vector<1x4x256xf32> to vector<4x256xf32>
    %10 = arith.mulf %9, %9 : vector<4x256xf32>
    %cst = arith.constant dense<0.000000e+00> : vector<256xf32>
    %11 = vector.multi_reduction <add>, %10, %cst [0] : vector<4x256xf32> to vector<256xf32>
    %12 = vector.shape_cast %11 : vector<256xf32> to vector<1x256xf32>
    %c0_5 = arith.constant 0 : index
    %c0_6 = arith.constant 0 : index
    %13 = vector.load %arg4[%c0_5, %c0_6] : memref<1x256xf32, #tpu.memory_space<vmem>>, vector<1x256xf32>
    %cst_7 = arith.constant dense<0xFF800000> : vector<256xf32>
    %14 = vector.multi_reduction <maximumf>, %9, %cst_7 [0] : vector<4x256xf32> to vector<256xf32>
    %15 = vector.shape_cast %14 : vector<256xf32> to vector<1x256xf32>
    %16 = arith.maximumf %13, %15 : vector<1x256xf32>
    %c0_8 = arith.constant 0 : index
    %c0_9 = arith.constant 0 : index
    %17 = vector.load %arg4[%c0_8, %c0_9] : memref<1x256xf32, #tpu.memory_space<vmem>>, vector<1x256xf32>
    tpu.vector_store %arg4[%c0_8, %c0_9], %16 {strides = array<i32>} : memref<1x256xf32, #tpu.memory_space<vmem>>, vector<1x256xf32>,
    %c0_10 = arith.constant 0 : index
    %c0_11 = arith.constant 0 : index
    %18 = vector.load %arg5[%c0_10, %c0_11] : memref<1x256xf32, #tpu.memory_space<vmem>>, vector<1x256xf32>
    %cst_12 = arith.constant dense<0x7F800000> : vector<256xf32>
    %19 = vector.multi_reduction <minimumf>, %10, %cst_12 [0] : vector<4x256xf32> to vector<256xf32>
    %20 = vector.shape_cast %19 : vector<256xf32> to vector<1x256xf32>
    %21 = arith.minimumf %18, %20 : vector<1x256xf32>
    %c0_13 = arith.constant 0 : index
    %c0_14 = arith.constant 0 : index
    %22 = vector.load %arg5[%c0_13, %c0_14] : memref<1x256xf32, #tpu.memory_space<vmem>>, vector<1x256xf32>
    tpu.vector_store %arg5[%c0_13, %c0_14], %21 {strides = array<i32>} : memref<1x256xf32, #tpu.memory_space<vmem>>, vector<1x256xf32>,
    %c0_15 = arith.constant 0 : index
    %c0_16 = arith.constant 0 : index
    %23 = vector.load %arg6[%c0_15, %c0_16] : memref<1x256xf32, #tpu.memory_space<vmem>>, vector<1x256xf32>
    %cst_17 = arith.constant dense<0xFF800000> : vector<256xf32>
    %24 = vector.multi_reduction <maximumf>, %10, %cst_17 [0] : vector<4x256xf32> to vector<256xf32>
    %25 = vector.shape_cast %24 : vector<256xf32> to vector<1x256xf32>
    %26 = arith.maximumf %23, %25 : vector<1x256xf32>
    %c0_18 = arith.constant 0 : index
    %c0_19 = arith.constant 0 : index
    %27 = vector.load %arg6[%c0_18, %c0_19] : memref<1x256xf32, #tpu.memory_space<vmem>>, vector<1x256xf32>
    tpu.vector_store %arg6[%c0_18, %c0_19], %26 {strides = array<i32>} : memref<1x256xf32, #tpu.memory_space<vmem>>, vector<1x256xf32>,
    %c0_20 = arith.constant 0 : index
    %c0_21 = arith.constant 0 : index
    %28 = vector.load %arg7[%c0_20, %c0_21] : memref<1x256xf32, #tpu.memory_space<vmem>>, vector<1x256xf32>
    %29 = arith.minimumf %28, %12 : vector<1x256xf32>
    %c0_22 = arith.constant 0 : index
    %c0_23 = arith.constant 0 : index
    %30 = vector.load %arg7[%c0_22, %c0_23] : memref<1x256xf32, #tpu.memory_space<vmem>>, vector<1x256xf32>
    tpu.vector_store %arg7[%c0_22, %c0_23], %29 {strides = array<i32>} : memref<1x256xf32, #tpu.memory_space<vmem>>, vector<1x256xf32>,
    %c0_24 = arith.constant 0 : index
    %c0_25 = arith.constant 0 : index
    %31 = vector.load %arg8[%c0_24, %c0_25] : memref<1x256xf32, #tpu.memory_space<vmem>>, vector<1x256xf32>
    %32 = arith.maximumf %31, %12 : vector<1x256xf32>
    %c0_26 = arith.constant 0 : index
    %c0_27 = arith.constant 0 : index
    %33 = vector.load %arg8[%c0_26, %c0_27] : memref<1x256xf32, #tpu.memory_space<vmem>>, vector<1x256xf32>
    tpu.vector_store %arg8[%c0_26, %c0_27], %32 {strides = array<i32>} : memref<1x256xf32, #tpu.memory_space<vmem>>, vector<1x256xf32>,
    %34 = arith.extui %5 : i1 to i32
    %c0_i32_28 = arith.constant 0 : i32
    %35 = arith.cmpi ne, %34, %c0_i32_28 : i32
    scf.if %35 {
      %c0_29 = arith.constant 0 : index
      %c0_30 = arith.constant 0 : index
      %36 = vector.load %arg4[%c0_29, %c0_30] : memref<1x256xf32, #tpu.memory_space<vmem>>, vector<1x256xf32>
      %37 = vector.shape_cast %36 : vector<1x256xf32> to vector<1x1x256xf32>
      %cst_31 = arith.constant dense<0xFF800000> : vector<1xf32>
      %38 = vector.multi_reduction <maximumf>, %37, %cst_31 [1, 2] : vector<1x1x256xf32> to vector<1xf32>
      %39 = vector.shape_cast %38 : vector<1xf32> to vector<1x1x1xf32>
      %40 = vector.extract %39[0, 0, 0] : f32 from vector<1x1x1xf32>
      %c0_32 = arith.constant 0 : index
      %41 = memref.load %arg3[%c0_32] : memref<5xf32, #tpu.memory_space<smem>>
      memref.store %40, %arg3[%c0_32] : memref<5xf32, #tpu.memory_space<smem>>
      %c0_33 = arith.constant 0 : index
      %c0_34 = arith.constant 0 : index
      %42 = vector.load %arg5[%c0_33, %c0_34] : memref<1x256xf32, #tpu.memory_space<vmem>>, vector<1x256xf32>
      %43 = vector.shape_cast %42 : vector<1x256xf32> to vector<1x1x256xf32>
      %cst_35 = arith.constant dense<0x7F800000> : vector<1xf32>
      %44 = vector.multi_reduction <minimumf>, %43, %cst_35 [1, 2] : vector<1x1x256xf32> to vector<1xf32>
      %45 = vector.shape_cast %44 : vector<1xf32> to vector<1x1x1xf32>
      %46 = vector.extract %45[0, 0, 0] : f32 from vector<1x1x1xf32>
      %c1 = arith.constant 1 : index
      %47 = memref.load %arg3[%c1] : memref<5xf32, #tpu.memory_space<smem>>
      memref.store %46, %arg3[%c1] : memref<5xf32, #tpu.memory_space<smem>>
      %c0_36 = arith.constant 0 : index
      %c0_37 = arith.constant 0 : index
      %48 = vector.load %arg6[%c0_36, %c0_37] : memref<1x256xf32, #tpu.memory_space<vmem>>, vector<1x256xf32>
      %49 = vector.shape_cast %48 : vector<1x256xf32> to vector<1x1x256xf32>
      %cst_38 = arith.constant dense<0xFF800000> : vector<1xf32>
      %50 = vector.multi_reduction <maximumf>, %49, %cst_38 [1, 2] : vector<1x1x256xf32> to vector<1xf32>
      %51 = vector.shape_cast %50 : vector<1xf32> to vector<1x1x1xf32>
      %52 = vector.extract %51[0, 0, 0] : f32 from vector<1x1x1xf32>
      %c2 = arith.constant 2 : index
      %53 = memref.load %arg3[%c2] : memref<5xf32, #tpu.memory_space<smem>>
      memref.store %52, %arg3[%c2] : memref<5xf32, #tpu.memory_space<smem>>
      %c0_39 = arith.constant 0 : index
      %c0_40 = arith.constant 0 : index
      %54 = vector.load %arg7[%c0_39, %c0_40] : memref<1x256xf32, #tpu.memory_space<vmem>>, vector<1x256xf32>
      %55 = vector.shape_cast %54 : vector<1x256xf32> to vector<1x1x256xf32>
      %cst_41 = arith.constant dense<0x7F800000> : vector<1xf32>
      %56 = vector.multi_reduction <minimumf>, %55, %cst_41 [1, 2] : vector<1x1x256xf32> to vector<1xf32>
      %57 = vector.shape_cast %56 : vector<1xf32> to vector<1x1x1xf32>
      %58 = vector.extract %57[0, 0, 0] : f32 from vector<1x1x1xf32>
      %c3 = arith.constant 3 : index
      %59 = memref.load %arg3[%c3] : memref<5xf32, #tpu.memory_space<smem>>
      memref.store %58, %arg3[%c3] : memref<5xf32, #tpu.memory_space<smem>>
      %c0_42 = arith.constant 0 : index
      %c0_43 = arith.constant 0 : index
      %60 = vector.load %arg8[%c0_42, %c0_43] : memref<1x256xf32, #tpu.memory_space<vmem>>, vector<1x256xf32>
      %61 = vector.shape_cast %60 : vector<1x256xf32> to vector<1x1x256xf32>
      %cst_44 = arith.constant dense<0xFF800000> : vector<1xf32>
      %62 = vector.multi_reduction <maximumf>, %61, %cst_44 [1, 2] : vector<1x1x256xf32> to vector<1xf32>
      %63 = vector.shape_cast %62 : vector<1xf32> to vector<1x1x1xf32>
      %64 = vector.extract %63[0, 0, 0] : f32 from vector<1x1x1xf32>
      %c4 = arith.constant 4 : index
      %65 = memref.load %arg3[%c4] : memref<5xf32, #tpu.memory_space<smem>>
      memref.store %64, %arg3[%c4] : memref<5xf32, #tpu.memory_space<smem>>
    } else {
    }
    return
  }
  func.func @transform_0(%arg0: i32, %arg1: i32) -> (i32, i32, i32) {
    %c0_i32 = arith.constant 0 : i32
    %c0_i32_0 = arith.constant 0 : i32
    return %arg0, %c0_i32, %arg1 : i32, i32, i32
  }
  func.func @transform_1(%arg0: i32, %arg1: i32) -> i32 {
    %c0_i32 = arith.constant 0 : i32
    %c0_i32_0 = arith.constant 0 : i32
    return %c0_i32 : i32
  }
}

</mosaic_0001>

<llo_original>
// kernel: tpu_custom_call.1
$region0: #{tpu_custom_call.1}
  #allocation0 [shape = 'u32[]', space=smem, size = 0x4, offset = 0x4, fixed_abs, tag = 'smem constant byte address 0x4 - core index']
  #allocation1 [shape = 'u32[72,128]{1,0:T(1,128)}', space=vmem, size = 0x9000, scoped, tag = 'internal scratch']
  #allocation2 [shape = 'f32[1,256]{1,0:T(1,128)}', space=vmem, size = 0x400, scoped, tag = 'scratch operand']
  #allocation3 [shape = 'f32[1,256]{1,0:T(1,128)}', space=vmem, size = 0x400, scoped, tag = 'scratch operand']
  #allocation4 [shape = 'f32[1,256]{1,0:T(1,128)}', space=vmem, size = 0x400, scoped, tag = 'scratch operand']
  #allocation5 [shape = 'f32[1,256]{1,0:T(1,128)}', space=vmem, size = 0x400, scoped, tag = 'scratch operand']
  #allocation6 [shape = 'f32[1,256]{1,0:T(1,128)}', space=vmem, size = 0x400, scoped, tag = 'scratch operand']
  %s0 = inlined_call_operand.hbm [shape: f32[2,4,256], index: 0, kind: input, shape index: {}]
  %s1 = inlined_call_operand.hbm [shape: f32[5], index: 1, kind: output, shape index: {}]
  %s2 = sld [smem:[#allocation0]]
  $region49: #{tpu_custom_call.1} parent=0
    _
  %s4 = ssub.s32 1, %s2
  %s5 = scalar_select 0, %s4, %s2
  $region1: #{tpu_custom_call.1} parent=0
    #allocation7 [shape = 'u8[8192]{0}', space=vmem, size = 0x2000, scoped, tag = 'input window, operand 0']
    #allocation8 [shape = 's32[2]{0}', space=sflag, size = 0x8, scoped, tag = 'scoped memory for tpu_custom_call.1']
    #allocation9 [shape = 's32[2]{0}', space=sflag, size = 0x8, scoped, tag = 'scoped memory for tpu_custom_call.1']
    #allocation10 [shape = 'u8[512]{0}', space=smem, size = 0x200, scoped, tag = 'output window, operand 0, single buffered']
    %6 = vsyncpa [#allocation8], 0
    %s7 = scalar_lea.sflag [#allocation8], 1
    %8 = vsyncpa %s7, 0
    %9 = vsyncpa [#allocation9], 0
    loop: start=0, step=1, limit=4
    $region2: #{tpu_custom_call.1} parent=1 // loop_pre_header
      _
    $region3: #{tpu_custom_call.1} parent=1 // loop_header
      %s11 = sphi 0, %s15
      %p12 = scmp.ge.s32.totalorder %s11, 4
      %s18 = sphi 0, %s30
      %s19 = sphi 0, %s26
      %s20 = sphi 0, %s18
      %s21 = sphi 0, %s19
      %s22 = sphi 0, %s20
      %s23 = sphi 0, %s21
      %s35 = sphi 0, %s37
      %s38 = sphi 0, %s35
      %s39 = sphi 0, %s38
      %s55 = sphi 0, %s39
      %s59 = sphi 0, %s59
      %s61 = sphi 0, %s59
      %s62 = sphi 0, %s61
      %s76 = sphi 0, %s62
    $region4: #{tpu_custom_call.1} parent=1 // loop_header_branch
      %14 = sbr.rel (%p12) target = $region8
    $region5: #{tpu_custom_call.1} parent=1 // loop_body
      %s16 = ssub.s32 %s11, 1
      %s17 = ssub.s32 %s11, 2
      %s24 = sadd.s32 1, %s19
      %p25 = scmp.ge.s32.totalorder %s24, 1
      %s26 = scalar_select %p25, 0, %s24
      %s27 = sadd.s32 1, %s18
      %s28 = scalar_select %p25, %s27, %s18
      %p29 = scmp.ge.s32.totalorder %s28, 2
      %s30 = scalar_select %p29, 0, %s28
      %s31 = ssub.s32 %s18, %s30
      %s32 = ssub.s32 %s19, %s26
      %s33 = sor.u32 %s31, %s32
      %p34 = scmp.eq.s32.totalorder %s33, 0
      %s36 = sadd.s32 %s35, 1
      %s37 = scalar_select %p34, %s35, %s36
      %p40 = pneg %p34
      %p41 = scmp.eq.s32.totalorder %s11, 1
      %p42 = por %p40, %p41
      %p43 = scmp.ne.s32.totalorder %s35, %s38
      %p44 = scmp.eq.s32.totalorder %s11, 0
      %p45 = por %p43, %p44
      %p46 = scmp.ne.s32.totalorder %s35, %s38
      %p47 = scmp.eq.s32.totalorder %s16, 1
      %p48 = por %p46, %p47
      %p49 = scmp.ne.s32.totalorder %s38, %s39
      %p50 = scmp.eq.s32.totalorder %s16, 0
      %p51 = por %p49, %p50
      %p52 = scmp.ne.s32.totalorder %s38, %s39
      %p53 = scmp.eq.s32.totalorder %s17, 1
      %p54 = por %p52, %p53
      %p56 = scmp.ne.s32.totalorder %s39, %s55
      %p57 = scmp.eq.s32.totalorder %s17, 0
      %p58 = por %p56, %p57
      %s60 = sadd.s32 %s59, 1
      %p63 = scmp.eq.s32.totalorder %s11, 1
      %p64 = scmp.ne.s32.totalorder %s59, %s61
      %p65 = scmp.eq.s32.totalorder %s11, 0
      %p66 = por %p64, %p65
      %p67 = scmp.ne.s32.totalorder %s59, %s61
      %p68 = scmp.eq.s32.totalorder %s16, 1
      %p69 = por %p67, %p68
      %p70 = scmp.ne.s32.totalorder %s61, %s62
      %p71 = scmp.eq.s32.totalorder %s16, 0
      %p72 = por %p70, %p71
      %p73 = scmp.ne.s32.totalorder %s61, %s62
      %p74 = scmp.eq.s32.totalorder %s17, 1
      %p75 = por %p73, %p74
      %p77 = scmp.ne.s32.totalorder %s62, %s76
      %p78 = scmp.eq.s32.totalorder %s17, 0
      %p79 = por %p77, %p78
      %p80 = scmp.le.s32.totalorder 1, %s11
      %p81 = scmp.lt.s32.totalorder %s11, 3
      %p82 = pnand %p80, %p81
      %p83 = pneg %p82
      // Predicated region
      $region9: #{tpu_custom_call.1} parent=5 // pred_check
        _
      $region10: #{tpu_custom_call.1} parent=5 // pred_check_branch
        %85 = sbr.rel (%p82) target = $region12
      $region11: #{tpu_custom_call.1} parent=5 // pred_region
        %s86 = ssub.s32 %s11, 1
      $region12: #{tpu_custom_call.1} parent=5 // pred_fallthru
        _
      %p87 = scmp.lt.s32.totalorder %s11, 2
      // Predicated region
      $region13: #{tpu_custom_call.1} parent=5 // pred_check
        %p88 = pneg %p87
      $region14: #{tpu_custom_call.1} parent=5 // pred_check_branch
        %90 = sbr.rel (%p88) target = $region16
      $region15: #{tpu_custom_call.1} parent=5 // pred_region
        // Predicated region
        $region17: #{tpu_custom_call.1} parent=15 // pred_check
          %p91 = pneg %p45
        $region18: #{tpu_custom_call.1} parent=15 // pred_check_branch
          %93 = sbr.rel (%p91) target = $region20
        $region19: #{tpu_custom_call.1} parent=15 // pred_region
          %s94 = sand.u32 %s35, 1
          %s95 = scalar_lea.sflag [#allocation8], %s94
          %s96 = sand.u32 %s35, 1
          %s97 = smul.addr %s96, 8
          %s98 = scalar_lea.vmem [#allocation7], %s97
          %s99 = smul.u32 2, %s19
          %101 = vsyncadd %s95, 0
          %s102 = smul.addr %s18, 2
          %s103 = sadd.s32 %s99, %s102
          %s104 = smul.addr %s103, 4
          %s105 = scalar_lea.hbm %s0, %s104
          %s107 = sshll.u32 %s105, 4
          %s108 = int_to_ptr.hbm [resolvable:$true] %s107
          %s109 = sshll.u32 %s98, 4
          %s110 = int_to_ptr.vmem [resolvable:$true] %s109
          %112 = dma.hbm_to_vmem [thread:$0]  %s108, 128, %s110, %s95
        $region20: #{tpu_custom_call.1} parent=15 // pred_fallthru
          _
      $region16: #{tpu_custom_call.1} parent=5 // pred_fallthru
        _
      %p113 = scmp.le.s32.totalorder 1, %s11
      %p114 = scmp.lt.s32.totalorder %s11, 3
      %p115 = pnand %p113, %p114
      %p116 = pneg %p115
      // Predicated region
      $region21: #{tpu_custom_call.1} parent=5 // pred_check
        _
      $region22: #{tpu_custom_call.1} parent=5 // pred_check_branch
        %118 = sbr.rel (%p115) target = $region24
      $region23: #{tpu_custom_call.1} parent=5 // pred_region
        %s119 = ssub.s32 %s11, 1
        %s120 = sand.u32 %s38, 1
        %s121 = scalar_lea.sflag [#allocation8], %s120
        %s122 = sand.u32 %s38, 1
        %s123 = smul.addr %s122, 8
        %s124 = scalar_lea.vmem [#allocation7], %s123
        // Predicated region
        $region25: #{tpu_custom_call.1} parent=23 // pred_check
          %p125 = pneg %p51
        $region26: #{tpu_custom_call.1} parent=23 // pred_check_branch
          %127 = sbr.rel (%p125) target = $region28
        $region27: #{tpu_custom_call.1} parent=23 // pred_region
          %129 = dma.done %s121, 128
        $region28: #{tpu_custom_call.1} parent=23 // pred_fallthru
          _
        %s130 = sand.u32 %s38, 1
        %s131 = scalar_lea.sflag [#allocation8], %s130
        %s132 = sand.u32 %s38, 1
        %s133 = smul.addr %s132, 8
        %s134 = scalar_lea.vmem [#allocation7], %s133
        %p135 = pneg %p51
        %p136 = pneg %p48
        %p137 = pneg %p72
        %p138 = pneg %p69
        %s139 = smul.u32 2, %s21
        %p140 = scmp.eq.s32.totalorder %s20, 0
        %p141 = scmp.eq.s32.totalorder %s21, 0
        %p142 = pnand %p140, %p141
        %p143 = pneg %p142
        %p144 = scmp.eq.s32.totalorder %s20, 1
        %p145 = pnand %p144, %p141
        %p146 = pneg %p145
        // Predicated region
        $region29: #{tpu_custom_call.1} parent=23 // pred_check
          _
        $region30: #{tpu_custom_call.1} parent=23 // pred_check_branch
          %148 = sbr.rel (%p142) target = $region32
        $region31: #{tpu_custom_call.1} parent=23 // pred_region
          %v149 = vlaneseq
          %vm150 = vcmp.ge.s32.totalorder %v149, 0
          %vm151 = vcmp.lt.s32.totalorder %v149, 256
          %vm152 = vmand %vm150, %vm151
          %153 = vst.msk [vmem:[#allocation2] sm:$0x3] %vm152, -inf
          %154 = vst.msk [vmem:[#allocation3] sm:$0x3] %vm152, inf
          %155 = vst.msk [vmem:[#allocation4] sm:$0x3] %vm152, -inf
          %156 = vst.msk [vmem:[#allocation5] sm:$0x3] %vm152, inf
          %157 = vst.msk [vmem:[#allocation6] sm:$0x3] %vm152, -inf
        $region32: #{tpu_custom_call.1} parent=23 // pred_fallthru
          _
        %v158 = vld [vmem:[%s124] sm:$0xff]
        %v159 = vmul.f32 %v158, %v158
        %161 = vst [vmem:[#allocation1] ss:$2 sm:$0xff] %v159
        %v162 = vld.sshfl [vmem:[#allocation1] sm:$0xff pattern:$0x75316420]
        %v163 = vld.sshfl [vmem:[#allocation1 + $0x8] sm:$0xff pattern:$0x75316420]
        %vm166 = vcmask 1043456
        %v167 = vsel %vm166, %v162, 0.0
        %v168 = vrot.slane %v167, 4
        %v169 = vadd.f32 %v167, %v168
        %v170 = vrot.slane %v169, 2
        %v171 = vadd.f32 %v169, %v170
        %v172 = vrot.slane %v171, 1
        %v173 = vadd.f32 %v171, %v172
        %v174 = vsel %vm166, %v163, 0.0
        %v175 = vrot.slane %v174, 4
        %v176 = vadd.f32 %v174, %v175
        %v177 = vrot.slane %v176, 2
        %v178 = vadd.f32 %v176, %v177
        %v179 = vrot.slane %v178, 1
        %v180 = vadd.f32 %v178, %v179
        %v181 = vld [vmem:[#allocation2] sm:$0x3]
        %183 = vst [vmem:[#allocation1] ss:$2 sm:$0xff] %v158
        %v184 = vld.sshfl [vmem:[#allocation1] sm:$0xff pattern:$0x75316420]
        %v185 = vld.sshfl [vmem:[#allocation1 + $0x8] sm:$0xff pattern:$0x75316420]
        %v188 = vsel %vm166, %v184, -inf
        %v189 = vrot.slane %v188, 4
        %v190 = vmax.f32 %v188, %v189
        %v191 = vrot.slane %v190, 2
        %v192 = vmax.f32 %v190, %v191
        %v193 = vrot.slane %v192, 1
        %v194 = vmax.f32 %v192, %v193
        %v195 = vsel %vm166, %v185, -inf
        %v196 = vrot.slane %v195, 4
        %v197 = vmax.f32 %v195, %v196
        %v198 = vrot.slane %v197, 2
        %v199 = vmax.f32 %v197, %v198
        %v200 = vrot.slane %v199, 1
        %v201 = vmax.f32 %v199, %v200
        %v204 = vrot.slane %v201, 7
        %vm205 = vcmask 1040384
        %v206 = vsel %vm205, %v194, %v204
        %v208 = vmax.f32 %v181, %v206
        %v209 = vlaneseq
        %vm210 = vcmp.ge.s32.totalorder %v209, 0
        %vm211 = vcmp.lt.s32.totalorder %v209, 256
        %vm212 = vmand %vm210, %vm211
        %213 = vst.msk [vmem:[#allocation2] sm:$0x3] %vm212, %v208
        %v214 = vld [vmem:[#allocation3] sm:$0x3]
        %215 = vst [vmem:[#allocation1] ss:$2 sm:$0xff] %v159
        %v216 = vld.sshfl [vmem:[#allocation1] sm:$0xff pattern:$0x75316420]
        %v217 = vld.sshfl [vmem:[#allocation1 + $0x8] sm:$0xff pattern:$0x75316420]
        %v220 = vsel %vm166, %v216, inf
        %v221 = vrot.slane %v220, 4
        %v222 = vmin.f32 %v220, %v221
        %v223 = vrot.slane %v222, 2
        %v224 = vmin.f32 %v222, %v223
        %v225 = vrot.slane %v224, 1
        %v226 = vmin.f32 %v224, %v225
        %v227 = vsel %vm166, %v217, inf
        %v228 = vrot.slane %v227, 4
        %v229 = vmin.f32 %v227, %v228
        %v230 = vrot.slane %v229, 2
        %v231 = vmin.f32 %v229, %v230
        %v232 = vrot.slane %v231, 1
        %v233 = vmin.f32 %v231, %v232
        %v236 = vrot.slane %v233, 7
        %v237 = vsel %vm205, %v226, %v236
        %v239 = vmin.f32 %v214, %v237
        %240 = vst.msk [vmem:[#allocation3] sm:$0x3] %vm212, %v239
        %v241 = vld [vmem:[#allocation4] sm:$0x3]
        %242 = vst [vmem:[#allocation1] ss:$2 sm:$0xff] %v159
        %v243 = vld.sshfl [vmem:[#allocation1] sm:$0xff pattern:$0x75316420]
        %v244 = vld.sshfl [vmem:[#allocation1 + $0x8] sm:$0xff pattern:$0x75316420]
        %v247 = vsel %vm166, %v243, -inf
        %v248 = vrot.slane %v247, 4
        %v249 = vmax.f32 %v247, %v248
        %v250 = vrot.slane %v249, 2
        %v251 = vmax.f32 %v249, %v250
        %v252 = vrot.slane %v251, 1
        %v253 = vmax.f32 %v251, %v252
        %v254 = vsel %vm166, %v244, -inf
        %v255 = vrot.slane %v254, 4
        %v256 = vmax.f32 %v254, %v255
        %v257 = vrot.slane %v256, 2
        %v258 = vmax.f32 %v256, %v257
        %v259 = vrot.slane %v258, 1
        %v260 = vmax.f32 %v258, %v259
        %v263 = vrot.slane %v260, 7
        %v264 = vsel %vm205, %v253, %v263
        %v266 = vmax.f32 %v241, %v264
        %267 = vst.msk [vmem:[#allocation4] sm:$0x3] %vm212, %v266
        %v268 = vld [vmem:[#allocation5] sm:$0x3]
        %v271 = vrot.slane %v180, 7
        %v272 = vsel %vm205, %v173, %v271
        %v274 = vmin.f32 %v268, %v272
        %275 = vst.msk [vmem:[#allocation5] sm:$0x3] %vm212, %v274
        %v276 = vld [vmem:[#allocation6] sm:$0x3]
        %v277 = vmax.f32 %v276, %v272
        %278 = vst.msk [vmem:[#allocation6] sm:$0x3] %vm212, %v277
        // Predicated region
        $region33: #{tpu_custom_call.1} parent=23 // pred_check
          _
        $region34: #{tpu_custom_call.1} parent=23 // pred_check_branch
          %280 = sbr.rel (%p145) target = $region36
        $region35: #{tpu_custom_call.1} parent=23 // pred_region
          %v281 = vld [vmem:[#allocation2] sm:$0x3]
          %v283 = vperm.slane %v281, 0
          %v284 = vperm.slane %v281, 1
          %v287 = vsel %vm205, %v283, -inf
          %v288 = vsel %vm205, %v284, -inf
          %v289 = vmax.f32 %v287, %v288
          %290 = vmax.xlane.f32.xlu0 %v289
          %v291 = vpop.xlane.xlu0 %290
          %v292 = vrot.slane %v291, 4
          %v293 = vmax.f32 %v291, %v292
          %v294 = vrot.slane %v293, 2
          %v295 = vmax.f32 %v293, %v294
          %v296 = vrot.slane %v295, 1
          %v297 = vmax.f32 %v295, %v296
          %s298 = vtos %v297
          %s299 = scalar_lea.smem [#allocation10], 0
          %300 = sst [smem:[%s299]] %s298
          %v301 = vld [vmem:[#allocation3] sm:$0x3]
          %v303 = vperm.slane %v301, 0
          %v304 = vperm.slane %v301, 1
          %v307 = vsel %vm205, %v303, inf
          %v308 = vsel %vm205, %v304, inf
          %v309 = vmin.f32 %v307, %v308
          %310 = vmin.xlane.f32.xlu0 %v309
          %v311 = vpop.xlane.xlu0 %310
          %v312 = vrot.slane %v311, 4
          %v313 = vmin.f32 %v311, %v312
          %v314 = vrot.slane %v313, 2
          %v315 = vmin.f32 %v313, %v314
          %v316 = vrot.slane %v315, 1
          %v317 = vmin.f32 %v315, %v316
          %s318 = vtos %v317
          %s319 = scalar_lea.smem [#allocation10], 1
          %320 = sst [smem:[%s319]] %s318
          %v321 = vld [vmem:[#allocation4] sm:$0x3]
          %v323 = vperm.slane %v321, 0
          %v324 = vperm.slane %v321, 1
          %v327 = vsel %vm205, %v323, -inf
          %v328 = vsel %vm205, %v324, -inf
          %v329 = vmax.f32 %v327, %v328
          %330 = vmax.xlane.f32.xlu0 %v329
          %v331 = vpop.xlane.xlu0 %330
          %v332 = vrot.slane %v331, 4
          %v333 = vmax.f32 %v331, %v332
          %v334 = vrot.slane %v333, 2
          %v335 = vmax.f32 %v333, %v334
          %v336 = vrot.slane %v335, 1
          %v337 = vmax.f32 %v335, %v336
          %s338 = vtos %v337
          %s339 = scalar_lea.smem [#allocation10], 2
          %340 = sst [smem:[%s339]] %s338
          %v341 = vld [vmem:[#allocation5] sm:$0x3]
          %v343 = vperm.slane %v341, 0
          %v344 = vperm.slane %v341, 1
          %v347 = vsel %vm205, %v343, inf
          %v348 = vsel %vm205, %v344, inf
          %v349 = vmin.f32 %v347, %v348
          %350 = vmin.xlane.f32.xlu0 %v349
          %v351 = vpop.xlane.xlu0 %350
          %v352 = vrot.slane %v351, 4
          %v353 = vmin.f32 %v351, %v352
          %v354 = vrot.slane %v353, 2
          %v355 = vmin.f32 %v353, %v354
          %v356 = vrot.slane %v355, 1
          %v357 = vmin.f32 %v355, %v356
          %s358 = vtos %v357
          %s359 = scalar_lea.smem [#allocation10], 3
          %360 = sst [smem:[%s359]] %s358
          %v361 = vld [vmem:[#allocation6] sm:$0x3]
          %v363 = vperm.slane %v361, 0
          %v364 = vperm.slane %v361, 1
          %v367 = vsel %vm205, %v363, -inf
          %v368 = vsel %vm205, %v364, -inf
          %v369 = vmax.f32 %v367, %v368
          %370 = vmax.xlane.f32.xlu0 %v369
          %v371 = vpop.xlane.xlu0 %370
          %v372 = vrot.slane %v371, 4
          %v373 = vmax.f32 %v371, %v372
          %v374 = vrot.slane %v373, 2
          %v375 = vmax.f32 %v373, %v374
          %v376 = vrot.slane %v375, 1
          %v377 = vmax.f32 %v375, %v376
          %s378 = vtos %v377
          %s379 = scalar_lea.smem [#allocation10], 4
          %380 = sst [smem:[%s379]] %s378
        $region36: #{tpu_custom_call.1} parent=23 // pred_fallthru
          _
        // Predicated region
        $region37: #{tpu_custom_call.1} parent=23 // pred_check
          %p381 = pneg %p69
        $region38: #{tpu_custom_call.1} parent=23 // pred_check_branch
          %383 = sbr.rel (%p381) target = $region40
        $region39: #{tpu_custom_call.1} parent=23 // pred_region
          %385 = vsyncadd [#allocation9], 0
          %s387 = sshll.u32 %s1, 4
          %s388 = int_to_ptr.hbm [resolvable:$true] %s387
          %390 = dma.smem_to_hbm [#allocation10], 16, %s388, [#allocation9]
        $region40: #{tpu_custom_call.1} parent=23 // pred_fallthru
          _
        // Predicated region
        $region41: #{tpu_custom_call.1} parent=23 // pred_check
          %p391 = pneg %p69
        $region42: #{tpu_custom_call.1} parent=23 // pred_check_branch
          %393 = sbr.rel (%p391) target = $region44
        $region43: #{tpu_custom_call.1} parent=23 // pred_region
          %395 = dma.done [#allocation9], 16
        $region44: #{tpu_custom_call.1} parent=23 // pred_fallthru
          _
        %396 = sfence
      $region24: #{tpu_custom_call.1} parent=5 // pred_fallthru
        _
      %p397 = scmp.le.s32.totalorder 2, %s11
      // Predicated region
      $region45: #{tpu_custom_call.1} parent=5 // pred_check
        %p398 = pneg %p397
      $region46: #{tpu_custom_call.1} parent=5 // pred_check_branch
        %400 = sbr.rel (%p398) target = $region48
      $region47: #{tpu_custom_call.1} parent=5 // pred_region
        %s401 = ssub.s32 %s11, 2
      $region48: #{tpu_custom_call.1} parent=5 // pred_fallthru
        _
    $region6: #{tpu_custom_call.1} parent=1 // loop_footer
      %s15 = sadd.s32 1, %s11
    $region7: #{tpu_custom_call.1} parent=1 // loop_footer_branch
      %10 = sbr.rel target = $region3
    $region8: #{tpu_custom_call.1} parent=1 // loop_exit
      _
    %402 = vsyncpa [#allocation8], 1
    %s403 = scalar_lea.sflag [#allocation8], 1
    %404 = vsyncpa %s403, 1
    %405 = vsyncpa [#allocation9], 1
    %s406 = scalar_lea.sflag [#allocation9], 1
    %407 = vsyncpa %s406, 1

</llo_original>
